<compile_context>
chip_gen: v7x
topology: tpu7x:2x2x1
jax: 0.10.0
libtpu: 0.0.40
codegen_flags: <defaults>
</compile_context>

<pallas_src>
import functools

import jax
import jax.numpy as jnp
from jax.experimental import pallas as pl
from jax.experimental.pallas import tpu as pltpu


_VMEM_LIMIT_BYTES = 32 * 1024 * 1024    # explicit scoped-VMEM limit (safe on v5e/v6e/v7x)
_TARGET_BLOCK_BYTES = 2 * 1024 * 1024   # ~2 MiB per block (4 double-buffered blocks ~8 MiB)
_MIN_GRID_BLOCKS = 4                    # keep a few grid points (v7x 2 TCs + pipelining)


def _collapse_perm(shape, perm):
    """Merge input axes that remain adjacent & in-order under `perm`.

    Returns (collapsed_input_shape, collapsed_perm) such that
      transpose(x, perm) ==
        transpose(x.reshape(cin_shape), cperm).reshape(out_shape)
    where both reshapes are contiguous (free).
    """
    groups = [[perm[0]]]
    for p in perm[1:]:
        if p == groups[-1][-1] + 1:
            groups[-1].append(p)
        else:
            groups.append([p])
    # Collapsed-input order: groups sorted by their first input axis.
    order = sorted(range(len(groups)), key=lambda g: groups[g][0])
    cin_shape = []
    for gi in order:
        size = 1
        for ax in groups[gi]:
            size *= shape[ax]
        cin_shape.append(size)
    pos = {gi: i for i, gi in enumerate(order)}      # group -> collapsed input axis
    cperm = tuple(pos[gi] for gi in range(len(groups)))
    return tuple(cin_shape), cperm


def _round_down_128(n):
    return max((n // 128) * 128, 128)


def _round_up_128(n):
    return max(((n + 127) // 128) * 128, 128)


def _transpose_kernel(x_ref, o_ref):
    # x_ref: (t1, t2) block, o_ref: (t2, t1) block.  Pure XLU work; hidden
    # under the HBM DMA for this memory-bound kernel.
    o_ref[...] = x_ref[...].T


def _batch_tiled_transpose_kernel(x_ref, o_ref):
    # x_ref: (tb, d1, d2), o_ref: (tb, d2, d1) -- whole matrices per batch row.
    o_ref[...] = jnp.transpose(x_ref[...], (0, 2, 1))


def _batched_transpose(x3):
    """x3: (B, d1, d2) -> (B, d2, d1) via a tiled Pallas transpose."""
    B, d1, d2 = x3.shape
    dtype = x3.dtype
    itemsize = jnp.dtype(dtype).itemsize
    budget = _TARGET_BLOCK_BYTES
    mat_bytes = d1 * d2 * itemsize
    out_shape = jax.ShapeDtypeStruct((B, d2, d1), dtype)

    if mat_bytes <= budget:
        # Whole (d1, d2) matrix fits in one block: output blocks are fully
        # contiguous HBM slabs.  Fold several batch elements per block when
        # the matrices are small (late VMamba stages, H*W = 49/196), but keep
        # at least min(B, _MIN_GRID_BLOCKS) grid points.
        tb = min(B, max(1, budget // mat_bytes))
        tb = min(tb, max(1, B // min(B, _MIN_GRID_BLOCKS)))
        if tb > 1:
            return pl.pallas_call(
                _batch_tiled_transpose_kernel,
                out_shape=out_shape,
                grid=(pl.cdiv(B, tb),),
                in_specs=[pl.BlockSpec((tb, d1, d2), lambda b: (b, 0, 0))],
                out_specs=pl.BlockSpec((tb, d2, d1), lambda b: (b, 0, 0)),
                compiler_params=pltpu.CompilerParams(
                    dimension_semantics=("parallel",),
                    vmem_limit_bytes=_VMEM_LIMIT_BYTES,
                ),
            )(x3)
        # One matrix per block.  If B is small, split the input lane axis so
        # the grid still has a few blocks (v7x megacore).
        t1, t2 = d1, d2
        if B < _MIN_GRID_BLOCKS and d2 >= 256:
            want = pl.cdiv(_MIN_GRID_BLOCKS, B)
            t2 = min(d2, _round_up_128(pl.cdiv(d2, want)))
        grid = (B, 1, pl.cdiv(d2, t2))
    else:
        # Tile within each (d1, d2) matrix.  Prefer t1 = full d1 so the output
        # minor dim is full (contiguous output slabs -- the store side is the
        # dominant loss otherwise); fall back to roughly square 128-mult tiles.
        if d1 * 128 * itemsize <= budget:
            t1 = d1
        else:
            side = _round_down_128(int((budget // itemsize) ** 0.5))
            t1 = side
        t2 = min(d2, _round_down_128(budget // (t1 * itemsize)))
        grid = (B, pl.cdiv(d1, t1), pl.cdiv(d2, t2))

    return pl.pallas_call(
        _transpose_kernel,
        out_shape=out_shape,
        grid=grid,
        in_specs=[pl.BlockSpec((None, t1, t2), lambda b, i, j: (b, i, j))],
        out_specs=pl.BlockSpec((None, t2, t1), lambda b, i, j: (b, j, i)),
        compiler_params=pltpu.CompilerParams(
            dimension_semantics=("parallel", "parallel", "parallel"),
            vmem_limit_bytes=_VMEM_LIMIT_BYTES,
        ),
    )(x3)


def _generic_permute_kernel(perm, x_ref, o_ref):
    o_ref[...] = jnp.transpose(x_ref[...], perm)


def _generic_permute(x, perm, out_shape):
    """Rare fallback for permutations that do not collapse to a transpose."""
    # TODO(synk): tile the two largest output dims instead of whole slabs if a
    # non-VMamba caller ever hits this path with large arrays.
    itemsize = jnp.dtype(x.dtype).itemsize
    if x.ndim >= 2 and perm[0] == 0:
        B = x.shape[0]
        slab_bytes = itemsize
        for d in x.shape[1:]:
            slab_bytes *= d
        # 2 double-buffered input slabs + 2 output slabs, kept well under the
        # scoped limit (also safe on v7x's 64 MiB physical VMEM).
        assert 4 * slab_bytes <= _VMEM_LIMIT_BYTES // 2, (
            "Permute fallback slab too large for VMEM; this perm needs tiling")
        inner_perm = tuple(p - 1 for p in perm[1:])
        in_block = (None,) + tuple(x.shape[1:])
        out_block = (None,) + tuple(out_shape[1:])
        n_in = x.ndim - 1

        def idx_map(b):
            return (b,) + (0,) * n_in

        return pl.pallas_call(
            functools.partial(_generic_permute_kernel, inner_perm),
            out_shape=jax.ShapeDtypeStruct(out_shape, x.dtype),
            grid=(B,),
            in_specs=[pl.BlockSpec(in_block, idx_map)],
            out_specs=pl.BlockSpec(out_block, idx_map),
            compiler_params=pltpu.CompilerParams(
                dimension_semantics=("parallel",),
                vmem_limit_bytes=_VMEM_LIMIT_BYTES,
            ),
        )(x)

    # Whole-array single block (only legal for small arrays with exotic perms).
    total_bytes = itemsize
    for d in x.shape:
        total_bytes *= d
    assert 2 * total_bytes <= _VMEM_LIMIT_BYTES // 2, (
        "Permute fallback array too large for a single VMEM block")
    return pl.pallas_call(
        functools.partial(_generic_permute_kernel, perm),
        out_shape=jax.ShapeDtypeStruct(out_shape, x.dtype),
        in_specs=[pl.BlockSpec(memory_space=pltpu.MemorySpace.VMEM)],
        out_specs=pl.BlockSpec(memory_space=pltpu.MemorySpace.VMEM),
        compiler_params=pltpu.CompilerParams(vmem_limit_bytes=_VMEM_LIMIT_BYTES),
    )(x)


def pallas_permute(x: jax.Array, perm) -> jax.Array:
    """Equivalent of torch.Tensor.permute(*perm) as a Pallas TPU kernel."""
    ndim = x.ndim
    perm = tuple(int(p) % ndim for p in perm) if ndim else tuple(perm)
    assert sorted(perm) == list(range(ndim)), "perm must be a permutation of the axes"
    out_shape = tuple(x.shape[p] for p in perm)

    if perm == tuple(range(ndim)):
        return x

    cin_shape, cperm = _collapse_perm(x.shape, perm)

    if cperm == (1, 0):
        # Pure 2-D transpose: treat as a batch of one.
        y = _batched_transpose(x.reshape((1,) + cin_shape))
        return y.reshape(out_shape)

    if cperm == (0, 2, 1):
        # Batched 2-D transpose -- covers VMamba's (0,2,3,1) and (0,3,1,2).
        y = _batched_transpose(x.reshape(cin_shape))
        return y.reshape(out_shape)

    # Anything else (never used by VMamba).
    return _generic_permute(x, perm, out_shape)


class Permute:
    """JAX/Pallas mirror of the PyTorch Permute module (no parameters)."""

    def __init__(self, *args):
        self.args = tuple(args)

    def __call__(self, x):
        return pallas_permute(x, self.args)


if __name__ == "__main__":
    key = jax.random.PRNGKey(0)

    # Small NCHW input: batch=2, channels=4, H=W=16 (VMamba-style usage).
    x = jax.random.normal(key, (2, 4, 16, 16), dtype=jnp.float32)

    # NCHW -> NHWC (Permute(0, 2, 3, 1)), as used inside VMamba blocks.
    y = jax.block_until_ready(Permute(0, 2, 3, 1)(x))
    ref = jnp.transpose(x, (0, 2, 3, 1))
    assert y.shape == (2, 16, 16, 4), y.shape
    assert y.dtype == x.dtype
    assert bool(jnp.array_equal(y, ref)), "mismatch vs reference permute"

    # Inverse permutation (NHWC -> NCHW) round-trips back to x.
    z = jax.block_until_ready(Permute(0, 3, 1, 2)(y))
    assert bool(jnp.array_equal(z, x)), "round-trip permute failed"

    # Exercise the batch-folded block path (small feature maps, larger B).
    x2 = jax.random.normal(jax.random.PRNGKey(1), (8, 4, 8, 8), dtype=jnp.float32)
    y2 = jax.block_until_ready(Permute(0, 2, 3, 1)(x2))
    ref2 = jnp.transpose(x2, (0, 2, 3, 1))
    assert bool(jnp.array_equal(y2, ref2)), "batch-tiled path mismatch"

    print("KERNEL_OK")
</pallas_src>

<mosaic_0001>
module attributes {stable_mosaic.version = 11 : i64} {
  func.func @_transpose_kernel(%arg0: i32, %arg1: i32, %arg2: i32, %arg3: memref<1x4x128xf32, #tpu.memory_space<vmem>>, %arg4: memref<1x128x4xf32, #tpu.memory_space<vmem>>) attributes {dimension_semantics = [#tpu.dimension_semantics<parallel>, #tpu.dimension_semantics<parallel>, #tpu.dimension_semantics<parallel>], iteration_bounds = array<i64: 2, 1, 2>, scalar_prefetch = 0 : i64, scratch_operands = 0 : i64, tpu.core_type = #tpu.core_type<tc>, window_params = [{transform_indices = @transform_0, window_bounds = array<i64: 1, 4, 128>}, {transform_indices = @transform_1, window_bounds = array<i64: 1, 128, 4>}]} {
    %c0 = arith.constant 0 : index
    %c0_0 = arith.constant 0 : index
    %c0_1 = arith.constant 0 : index
    %0 = vector.load %arg3[%c0, %c0_0, %c0_1] : memref<1x4x128xf32, #tpu.memory_space<vmem>>, vector<1x4x128xf32>
    %1 = vector.shape_cast %0 : vector<1x4x128xf32> to vector<4x128xf32>
    %2 = tpu.transpose %1, [1, 0] : vector<4x128xf32> -> vector<128x4xf32>
    %c0_2 = arith.constant 0 : index
    %c0_3 = arith.constant 0 : index
    %c0_4 = arith.constant 0 : index
    %3 = vector.load %arg4[%c0_2, %c0_3, %c0_4] : memref<1x128x4xf32, #tpu.memory_space<vmem>>, vector<1x128x4xf32>
    %4 = vector.shape_cast %3 : vector<1x128x4xf32> to vector<128x4xf32>
    %5 = vector.shape_cast %2 : vector<128x4xf32> to vector<1x128x4xf32>
    tpu.vector_store %arg4[%c0_2, %c0_3, %c0_4], %5 {strides = array<i32>} : memref<1x128x4xf32, #tpu.memory_space<vmem>>, vector<1x128x4xf32>,
    return
  }
  func.func @transform_0(%arg0: i32, %arg1: i32, %arg2: i32) -> (i32, i32, i32) {
    %c0_i32 = arith.constant 0 : i32
    return %arg0, %arg1, %arg2 : i32, i32, i32
  }
  func.func @transform_1(%arg0: i32, %arg1: i32, %arg2: i32) -> (i32, i32, i32) {
    %c0_i32 = arith.constant 0 : i32
    return %arg0, %arg2, %arg1 : i32, i32, i32
  }
}

</mosaic_0001>

<llo_original>
// kernel: tpu_custom_call.1
$region0: #{tpu_custom_call.1}
  #allocation0 [shape = 'u32[]', space=smem, size = 0x4, offset = 0x4, fixed_abs, tag = 'smem constant byte address 0x4 - core index']
  #allocation1 [shape = 'u32[144,128]{1,0:T(1,128)}', space=vmem, size = 0x12000, scoped, tag = 'internal scratch']
  %s0 = inlined_call_operand.hbm [shape: f32[2,4,256], index: 0, kind: input, shape index: {}]
  %s1 = inlined_call_operand.vmem [shape: f32[2,256,4], index: 1, kind: output, shape index: {}]
  %s2 = sld [smem:[#allocation0]]
  $region41: #{tpu_custom_call.1} parent=0
    _
  %s4 = ssub.s32 1, %s2
  %s5 = scalar_select 0, %s4, %s2
  $region1: #{tpu_custom_call.1} parent=0
    #allocation2 [shape = 'u8[4096]{0}', space=vmem, size = 0x1000, scoped, tag = 'input window, operand 0']
    #allocation3 [shape = 's32[2]{0}', space=sflag, size = 0x8, scoped, tag = 'scoped memory for tpu_custom_call.1']
    %6 = vsyncpa [#allocation3], 0
    %s7 = scalar_lea.sflag [#allocation3], 1
    %8 = vsyncpa %s7, 0
    loop: start=0, step=1, limit=6
    $region2: #{tpu_custom_call.1} parent=1 // loop_pre_header
      _
    $region3: #{tpu_custom_call.1} parent=1 // loop_header
      %s10 = sphi 0, %s14
      %p11 = scmp.ge.s32.totalorder %s10, 6
      %s17 = sphi 0, %s36
      %s18 = sphi 0, %s32
      %s19 = sphi 0, %s28
      %s20 = sphi 0, %s17
      %s21 = sphi 0, %s18
      %s22 = sphi 0, %s19
      %s23 = sphi 0, %s20
      %s24 = sphi 0, %s21
      %s25 = sphi 0, %s22
      %s43 = sphi 0, %s45
      %s46 = sphi 0, %s43
      %s47 = sphi 0, %s46
      %s63 = sphi 0, %s47
      %s73 = sphi 0, %s75
      %s76 = sphi 0, %s73
      %s77 = sphi 0, %s76
      %s93 = sphi 0, %s77
    $region4: #{tpu_custom_call.1} parent=1 // loop_header_branch
      %13 = sbr.rel (%p11) target = $region8
    $region5: #{tpu_custom_call.1} parent=1 // loop_body
      %s15 = ssub.s32 %s10, 1
      %s16 = ssub.s32 %s10, 2
      %s26 = sadd.s32 1, %s19
      %p27 = scmp.ge.s32.totalorder %s26, 2
      %s28 = scalar_select %p27, 0, %s26
      %s29 = sadd.s32 1, %s18
      %s30 = scalar_select %p27, %s29, %s18
      %p31 = scmp.ge.s32.totalorder %s30, 1
      %s32 = scalar_select %p31, 0, %s30
      %s33 = sadd.s32 1, %s17
      %s34 = scalar_select %p31, %s33, %s17
      %p35 = scmp.ge.s32.totalorder %s34, 2
      %s36 = scalar_select %p35, 0, %s34
      %s37 = ssub.s32 %s17, %s36
      %s38 = ssub.s32 %s18, %s32
      %s39 = sor.u32 %s37, %s38
      %s40 = ssub.s32 %s19, %s28
      %s41 = sor.u32 %s39, %s40
      %p42 = scmp.eq.s32.totalorder %s41, 0
      %s44 = sadd.s32 %s43, 1
      %s45 = scalar_select %p42, %s43, %s44
      %p48 = pneg %p42
      %p49 = scmp.eq.s32.totalorder %s10, 3
      %p50 = por %p48, %p49
      %p51 = scmp.ne.s32.totalorder %s43, %s46
      %p52 = scmp.eq.s32.totalorder %s10, 0
      %p53 = por %p51, %p52
      %p54 = scmp.ne.s32.totalorder %s43, %s46
      %p55 = scmp.eq.s32.totalorder %s15, 3
      %p56 = por %p54, %p55
      %p57 = scmp.ne.s32.totalorder %s46, %s47
      %p58 = scmp.eq.s32.totalorder %s15, 0
      %p59 = por %p57, %p58
      %p60 = scmp.ne.s32.totalorder %s46, %s47
      %p61 = scmp.eq.s32.totalorder %s16, 3
      %p62 = por %p60, %p61
      %p64 = scmp.ne.s32.totalorder %s47, %s63
      %p65 = scmp.eq.s32.totalorder %s16, 0
      %p66 = por %p64, %p65
      %s67 = ssub.s32 %s17, %s36
      %s68 = ssub.s32 %s19, %s28
      %s69 = sor.u32 %s67, %s68
      %s70 = ssub.s32 %s18, %s32
      %s71 = sor.u32 %s69, %s70
      %p72 = scmp.eq.s32.totalorder %s71, 0
      %s74 = sadd.s32 %s73, 1
      %s75 = scalar_select %p72, %s73, %s74
      %p78 = pneg %p72
      %p79 = scmp.eq.s32.totalorder %s10, 3
      %p80 = por %p78, %p79
      %p81 = scmp.ne.s32.totalorder %s73, %s76
      %p82 = scmp.eq.s32.totalorder %s10, 0
      %p83 = por %p81, %p82
      %p84 = scmp.ne.s32.totalorder %s73, %s76
      %p85 = scmp.eq.s32.totalorder %s15, 3
      %p86 = por %p84, %p85
      %p87 = scmp.ne.s32.totalorder %s76, %s77
      %p88 = scmp.eq.s32.totalorder %s15, 0
      %p89 = por %p87, %p88
      %p90 = scmp.ne.s32.totalorder %s76, %s77
      %p91 = scmp.eq.s32.totalorder %s16, 3
      %p92 = por %p90, %p91
      %p94 = scmp.ne.s32.totalorder %s77, %s93
      %p95 = scmp.eq.s32.totalorder %s16, 0
      %p96 = por %p94, %p95
      %p97 = scmp.le.s32.totalorder 1, %s10
      %p98 = scmp.lt.s32.totalorder %s10, 5
      %p99 = pnand %p97, %p98
      %p100 = pneg %p99
      // Predicated region
      $region9: #{tpu_custom_call.1} parent=5 // pred_check
        _
      $region10: #{tpu_custom_call.1} parent=5 // pred_check_branch
        %102 = sbr.rel (%p99) target = $region12
      $region11: #{tpu_custom_call.1} parent=5 // pred_region
        %s103 = ssub.s32 %s10, 1
      $region12: #{tpu_custom_call.1} parent=5 // pred_fallthru
        _
      %p104 = scmp.lt.s32.totalorder %s10, 4
      // Predicated region
      $region13: #{tpu_custom_call.1} parent=5 // pred_check
        %p105 = pneg %p104
      $region14: #{tpu_custom_call.1} parent=5 // pred_check_branch
        %107 = sbr.rel (%p105) target = $region16
      $region15: #{tpu_custom_call.1} parent=5 // pred_region
        // Predicated region
        $region17: #{tpu_custom_call.1} parent=15 // pred_check
          %p108 = pneg %p53
        $region18: #{tpu_custom_call.1} parent=15 // pred_check_branch
          %110 = sbr.rel (%p108) target = $region20
        $region19: #{tpu_custom_call.1} parent=15 // pred_region
          %s111 = sand.u32 %s43, 1
          %s112 = scalar_lea.sflag [#allocation3], %s111
          %s113 = sand.u32 %s43, 1
          %s114 = smul.addr %s113, 4
          %s115 = scalar_lea.vmem [#allocation2], %s114
          %s117 = ssub.s32 64, 64
          %118 = vsyncadd %s112, %s117
          %s119 = smul.addr %s18, 2
          %s120 = sadd.s32 %s19, %s119
          %s121 = smul.addr %s17, 2
          %s122 = sadd.s32 %s120, %s121
          %s123 = smul.addr %s122, 64
          %s124 = scalar_lea.hbm %s0, %s123
          %s126 = sshll.u32 %s115, 4
          %s127 = int_to_ptr.vmem [resolvable:$true] %s126
          %129 = dma.hbm_to_vmem [thread:$0]  %s124, 64, %s127, %s112
        $region20: #{tpu_custom_call.1} parent=15 // pred_fallthru
          _
      $region16: #{tpu_custom_call.1} parent=5 // pred_fallthru
        _
      %p130 = scmp.le.s32.totalorder 1, %s10
      %p131 = scmp.lt.s32.totalorder %s10, 5
      %p132 = pnand %p130, %p131
      %p133 = pneg %p132
      // Predicated region
      $region21: #{tpu_custom_call.1} parent=5 // pred_check
        _
      $region22: #{tpu_custom_call.1} parent=5 // pred_check_branch
        %135 = sbr.rel (%p132) target = $region24
      $region23: #{tpu_custom_call.1} parent=5 // pred_region
        %s136 = ssub.s32 %s10, 1
        %s137 = sand.u32 %s46, 1
        %s138 = scalar_lea.sflag [#allocation3], %s137
        %s139 = sand.u32 %s46, 1
        %s140 = smul.addr %s139, 4
        %s141 = scalar_lea.vmem [#allocation2], %s140
        // Predicated region
        $region25: #{tpu_custom_call.1} parent=23 // pred_check
          %p142 = pneg %p59
        $region26: #{tpu_custom_call.1} parent=23 // pred_check_branch
          %144 = sbr.rel (%p142) target = $region28
        $region27: #{tpu_custom_call.1} parent=23 // pred_region
          %145 = dma.done %s138, 64
        $region28: #{tpu_custom_call.1} parent=23 // pred_fallthru
          _
        %s146 = sand.u32 %s46, 1
        %s147 = scalar_lea.sflag [#allocation3], %s146
        %s148 = sand.u32 %s46, 1
        %s149 = smul.addr %s148, 4
        %s150 = scalar_lea.vmem [#allocation2], %s149
        %p151 = pneg %p59
        %p152 = pneg %p56
        %p153 = pneg %p89
        %p154 = pneg %p86
        %s155 = smul.u32 16, %s22
        %p156 = scmp.lt.s32.totalorder %s20, 1
        %s157 = scalar_select %p156, %s20, 1
        %p158 = scmp.lt.s32.totalorder %s155, 31
        %s159 = scalar_select %p158, %s155, 31
        %p160 = scmp.lt.s32.totalorder %s21, 0
        %s161 = scalar_select %p160, %s21, 0
        %s162 = sadd.s32 %s161, %s159
        %s163 = smul.addr %s157, 32
        %s164 = sadd.s32 %s162, %s163
        %s165 = smul.addr %s164, 8
        %s166 = scalar_lea.vmem %s1, %s165
        %s167 = smul.u32 16, %s22
        %p168 = scmp.lt.s32.totalorder %s20, 1
        %s169 = scalar_select %p168, %s20, 1
        %p170 = scmp.lt.s32.totalorder %s167, 31
        %s171 = scalar_select %p170, %s167, 31
        %p172 = scmp.lt.s32.totalorder %s21, 0
        %s173 = scalar_select %p172, %s21, 0
        %s174 = sadd.s32 %s173, %s171
        %s175 = smul.addr %s169, 32
        %s176 = sadd.s32 %s174, %s175
        %s177 = smul.addr %s176, 8
        %s178 = scalar_lea.vmem %s1, %s177
        %s179 = smul.u32 16, %s22
        %v180 = vld [vmem:[%s141] sm:$0xf]
        %181 = vxpose.xlu0.b32.start [1/16] %v180, 128
        %182 = vxpose.xlu0.b32.cont [2/16] 0.0, 128
        %183 = vxpose.xlu0.b32.cont [3/16] 0.0, 128
        %184 = vxpose.xlu0.b32.cont [4/16] 0.0, 128
        %185 = vxpose.xlu0.b32.cont [5/16] 0.0, 128
        %186 = vxpose.xlu0.b32.cont [6/16] 0.0, 128
        %187 = vxpose.xlu0.b32.cont [7/16] 0.0, 128
        %188 = vxpose.xlu0.b32.cont [8/16] 0.0, 128
        %189 = vxpose.xlu0.b32.cont [9/16] 0.0, 128
        %190 = vxpose.xlu0.b32.cont [10/16] 0.0, 128
        %191 = vxpose.xlu0.b32.cont [11/16] 0.0, 128
        %192 = vxpose.xlu0.b32.cont [12/16] 0.0, 128
        %193 = vxpose.xlu0.b32.cont [13/16] 0.0, 128
        %194 = vxpose.xlu0.b32.cont [14/16] 0.0, 128
        %195 = vxpose.xlu0.b32.cont [15/16] 0.0, 128
        %196 = vxpose.xlu0.b32.end [16/16] 0.0, 128
        %v197 = vpop.trf.xlu0
        %v198 = vpop.trf.xlu0
        %v199 = vpop.trf.xlu0
        %v200 = vpop.trf.xlu0
        %v201 = vpop.trf.xlu0
        %v202 = vpop.trf.xlu0
        %v203 = vpop.trf.xlu0
        %v204 = vpop.trf.xlu0
        %v205 = vpop.trf.xlu0
        %v206 = vpop.trf.xlu0
        %v207 = vpop.trf.xlu0
        %v208 = vpop.trf.xlu0
        %v209 = vpop.trf.xlu0
        %v210 = vpop.trf.xlu0
        %v211 = vpop.trf.xlu0
        %v212 = vpop.trf.xlu0
        %vm213 = vcmask 31744
        %214 = vst.msk [vmem:[%s178] sm:$0xff] %vm213, %v197
        %215 = vst.msk [vmem:[%s178 + $0x8] sm:$0xff] %vm213, %v198
        %216 = vst.msk [vmem:[%s178 + $0x10] sm:$0xff] %vm213, %v199
        %217 = vst.msk [vmem:[%s178 + $0x18] sm:$0xff] %vm213, %v200
        %218 = vst.msk [vmem:[%s178 + $0x20] sm:$0xff] %vm213, %v201
        %219 = vst.msk [vmem:[%s178 + $0x28] sm:$0xff] %vm213, %v202
        %220 = vst.msk [vmem:[%s178 + $0x30] sm:$0xff] %vm213, %v203
        %221 = vst.msk [vmem:[%s178 + $0x38] sm:$0xff] %vm213, %v204
        %222 = vst.msk [vmem:[%s178 + $0x40] sm:$0xff] %vm213, %v205
        %223 = vst.msk [vmem:[%s178 + $0x48] sm:$0xff] %vm213, %v206
        %224 = vst.msk [vmem:[%s178 + $0x50] sm:$0xff] %vm213, %v207
        %225 = vst.msk [vmem:[%s178 + $0x58] sm:$0xff] %vm213, %v208
        %226 = vst.msk [vmem:[%s178 + $0x60] sm:$0xff] %vm213, %v209
        %227 = vst.msk [vmem:[%s178 + $0x68] sm:$0xff] %vm213, %v210
        %228 = vst.msk [vmem:[%s178 + $0x70] sm:$0xff] %vm213, %v211
        %229 = vst.msk [vmem:[%s178 + $0x78] sm:$0xff] %vm213, %v212
        %s230 = smul.u32 16, %s22
        %p231 = scmp.lt.s32.totalorder %s20, 1
        %s232 = scalar_select %p231, %s20, 1
        %p233 = scmp.lt.s32.totalorder %s230, 31
        %s234 = scalar_select %p233, %s230, 31
        %p235 = scmp.lt.s32.totalorder %s21, 0
        %s236 = scalar_select %p235, %s21, 0
        %s237 = sadd.s32 %s236, %s234
        %s238 = smul.addr %s232, 32
        %s239 = sadd.s32 %s237, %s238
        %s240 = smul.addr %s239, 8
        %s241 = scalar_lea.vmem %s1, %s240
        // Predicated region
        $region29: #{tpu_custom_call.1} parent=23 // pred_check
          %p242 = pneg %p86
        $region30: #{tpu_custom_call.1} parent=23 // pred_check_branch
          %244 = sbr.rel (%p242) target = $region32
        $region31: #{tpu_custom_call.1} parent=23 // pred_region
          %s245 = smul.u32 16, %s22
        $region32: #{tpu_custom_call.1} parent=23 // pred_fallthru
          _
      $region24: #{tpu_custom_call.1} parent=5 // pred_fallthru
        _
      %p246 = scmp.le.s32.totalorder 2, %s10
      // Predicated region
      $region33: #{tpu_custom_call.1} parent=5 // pred_check
        %p247 = pneg %p246
      $region34: #{tpu_custom_call.1} parent=5 // pred_check_branch
        %249 = sbr.rel (%p247) target = $region36
      $region35: #{tpu_custom_call.1} parent=5 // pred_region
        %s250 = ssub.s32 %s10, 2
        // Predicated region
        $region37: #{tpu_custom_call.1} parent=35 // pred_check
          %p251 = pneg %p92
        $region38: #{tpu_custom_call.1} parent=35 // pred_check_branch
          %253 = sbr.rel (%p251) target = $region40
        $region39: #{tpu_custom_call.1} parent=35 // pred_region
          %s254 = smul.u32 16, %s25
          %p255 = scmp.lt.s32.totalorder %s23, 1
          %s256 = scalar_select %p255, %s23, 1
          %p257 = scmp.lt.s32.totalorder %s254, 31
          %s258 = scalar_select %p257, %s254, 31
          %p259 = scmp.lt.s32.totalorder %s24, 0
          %s260 = scalar_select %p259, %s24, 0
          %s261 = sadd.s32 %s260, %s258
          %s262 = smul.addr %s256, 32
          %s263 = sadd.s32 %s261, %s262
          %s264 = smul.addr %s263, 8
          %s265 = scalar_lea.vmem %s1, %s264
        $region40: #{tpu_custom_call.1} parent=35 // pred_fallthru
          _
      $region36: #{tpu_custom_call.1} parent=5 // pred_fallthru
        _
    $region6: #{tpu_custom_call.1} parent=1 // loop_footer
      %s14 = sadd.s32 1, %s10
    $region7: #{tpu_custom_call.1} parent=1 // loop_footer_branch
      %9 = sbr.rel target = $region3
    $region8: #{tpu_custom_call.1} parent=1 // loop_exit
      _
    %266 = vsyncpa [#allocation3], 1
    %s267 = scalar_lea.sflag [#allocation3], 1
    %268 = vsyncpa %s267, 1

</llo_original>
